<compile_context>
chip_gen: v6e
topology: v6e:2x2x1
jax: 0.10.0
libtpu: 0.0.40
codegen_flags: <defaults>
</compile_context>

<pallas_src>
import jax
import jax.numpy as jnp
from jax.experimental import pallas as pl
from jax.experimental.pallas import tpu as pltpu

# getdims((10000, 200)) -> [200, 32, 16]
D_IN, D_HID, D_LAT = 200, 32, 16
DP_HEAD = 256                  # per-head lane-aligned width inside the fused matmul
DP_HEADS = 3 * DP_HEAD         # fused mean|disp|pi matmul width (768)

BATCH = 16                     # small demo batch


def _softplus(x):
    # numerically-stable softplus = log(1 + exp(x))
    return jnp.maximum(x, 0.0) + jnp.log1p(jnp.exp(-jnp.abs(x)))


def scdbec_fwd_kernel(x_ref,
                      w_enc_ref, b_enc_ref,
                      w_mu_ref, b_mu_ref,
                      w_dec_ref, b_dec_ref,
                      w_heads_ref, b_heads_ref,
                      z_ref, mean_ref, disp_ref, pi_ref):
    x = x_ref[...]                                              # (TB, 200)

    # encoder: Linear(200, 32) + ReLU
    h = jnp.maximum(
        jnp.dot(x, w_enc_ref[...], preferred_element_type=jnp.float32)
        + b_enc_ref[...], 0.0)                                  # (TB, 32)

    # _enc_mu: Linear(32, 16)
    z = (jnp.dot(h, w_mu_ref[...], preferred_element_type=jnp.float32)
         + b_mu_ref[...])                                       # (TB, 16)
    z_ref[...] = z

    # decoder: Linear(16, 32) + ReLU
    hd = jnp.maximum(
        jnp.dot(z, w_dec_ref[...], preferred_element_type=jnp.float32)
        + b_dec_ref[...], 0.0)                                  # (TB, 32)

    # fused heads: one (32, 768) matmul for mean|disp|pi (each padded to 256
    # lanes so per-head slices start on lane-aligned offsets 0 / 256 / 512).
    lin = (jnp.dot(hd, w_heads_ref[...], preferred_element_type=jnp.float32)
           + b_heads_ref[...])                                  # (TB, 768)

    mean_lin = lin[:, 0:D_IN]
    disp_lin = lin[:, DP_HEAD:DP_HEAD + D_IN]
    pi_lin = lin[:, 2 * DP_HEAD:2 * DP_HEAD + D_IN]

    # direct per-head stores (no concat temporary)
    mean_ref[...] = jnp.clip(jnp.exp(mean_lin), 1e-5, 1e6)       # MeanAct
    disp_ref[...] = jnp.clip(_softplus(disp_lin), 1e-4, 1e4)     # DispAct
    pi_ref[...] = pl.reciprocal(1.0 + jnp.exp(-pi_lin), approx=True)  # Sigmoid (EUP)


def _pad_cols(a, width):
    return jnp.pad(a, ((0, 0), (0, width - a.shape[1])))


def pack_params(p):
    """Fuse the three head weights/biases into one lane-aligned 768-wide block."""
    w_heads = jnp.concatenate(
        [_pad_cols(p["w_mean"], DP_HEAD),
         _pad_cols(p["w_disp"], DP_HEAD),
         _pad_cols(p["w_pi"], DP_HEAD)], axis=1)                 # (32, 768)
    b_heads = jnp.concatenate(
        [_pad_cols(p["b_mean"], DP_HEAD),
         _pad_cols(p["b_disp"], DP_HEAD),
         _pad_cols(p["b_pi"], DP_HEAD)], axis=1)                 # (1, 768)
    return (p["w_enc"], p["b_enc"], p["w_mu"], p["b_mu"],
            p["w_dec"], p["b_dec"], w_heads, b_heads)


def _choose_tb(B, tb):
    """Batch tile: multiple of 8, large for throughput, >=2 grid steps when big
    (so v7x's two TensorCores both get work via the 'parallel' grid axis)."""
    b8 = -(-B // 8) * 8
    TB = min(tb, b8)
    if b8 >= 1024:
        half = ((-(-b8 // 2)) + 7) // 8 * 8     # ceil(b8/2) rounded up to mult of 8
        TB = min(TB, half)
    return max(TB, 8)


def scdbec_forward(x, params, *, tb=1024):
    """x: (B, 200) f32.  params: dict of raw (in, out)-layout weights/biases."""
    B, d_in = x.shape
    assert d_in == D_IN

    TB = _choose_tb(B, tb)
    B_pad = -(-B // TB) * TB
    x_in = x if B_pad == B else jnp.pad(x, ((0, B_pad - B), (0, 0)))  # rows only

    packed = pack_params(params)

    def const2d(shape):
        return pl.BlockSpec(shape, lambda i: (0, 0))

    in_specs = [
        pl.BlockSpec((TB, D_IN), lambda i: (i, 0)),       # x, full-last-dim block
        const2d((D_IN, D_HID)), const2d((1, D_HID)),      # encoder
        const2d((D_HID, D_LAT)), const2d((1, D_LAT)),     # _enc_mu
        const2d((D_LAT, D_HID)), const2d((1, D_HID)),     # decoder
        const2d((D_HID, DP_HEADS)), const2d((1, DP_HEADS)),  # fused heads
    ]
    out_specs = [
        pl.BlockSpec((TB, D_LAT), lambda i: (i, 0)),      # z (B_pad, 16)
        pl.BlockSpec((TB, D_IN), lambda i: (i, 0)),       # mean (B_pad, 200)
        pl.BlockSpec((TB, D_IN), lambda i: (i, 0)),       # disp (B_pad, 200)
        pl.BlockSpec((TB, D_IN), lambda i: (i, 0)),       # pi   (B_pad, 200)
    ]
    out_shape = [
        jax.ShapeDtypeStruct((B_pad, D_LAT), jnp.float32),
        jax.ShapeDtypeStruct((B_pad, D_IN), jnp.float32),
        jax.ShapeDtypeStruct((B_pad, D_IN), jnp.float32),
        jax.ShapeDtypeStruct((B_pad, D_IN), jnp.float32),
    ]

    # VMEM budget: double-buffered I/O tiles + weights + in-kernel temporaries.
    f32 = 4
    io_tiles = 2 * TB * (D_IN + D_LAT + 3 * D_IN) * f32
    weights = 2 * f32 * (D_IN * D_HID + D_HID + D_HID * D_LAT + D_LAT
                         + D_LAT * D_HID + D_HID + D_HID * DP_HEADS + DP_HEADS)
    temps = TB * (D_HID + D_LAT + D_HID + DP_HEADS + 3 * DP_HEAD) * f32
    est = io_tiles + weights + temps
    # Always set explicitly: v5e default scoped limit is only 16 MiB; cap at
    # 48 MiB to leave headroom under v7x's 64 MiB physical VMEM.
    vmem_limit = int(min(max(2 * est, 16 * 1024 * 1024), 48 * 1024 * 1024))

    z, mean, disp, pi = pl.pallas_call(
        scdbec_fwd_kernel,
        grid=(B_pad // TB,),
        in_specs=in_specs,
        out_specs=out_specs,
        out_shape=out_shape,
        compiler_params=pltpu.CompilerParams(
            dimension_semantics=("parallel",),
            vmem_limit_bytes=vmem_limit),
    )(x_in, *packed)

    if B_pad != B:
        z, mean, disp, pi = z[:B], mean[:B], disp[:B], pi[:B]
    return z, mean, disp, pi


def _init_linear(key, fan_in, fan_out):
    # deterministic, PyTorch-Linear-like uniform(-1/sqrt(fan_in), 1/sqrt(fan_in)).
    kw, kb = jax.random.split(key)
    bound = 1.0 / jnp.sqrt(fan_in)
    w = jax.random.uniform(kw, (fan_in, fan_out), jnp.float32, -bound, bound)
    b = jax.random.uniform(kb, (1, fan_out), jnp.float32, -bound, bound)
    return w, b


def init_params(key):
    ks = jax.random.split(key, 6)
    w_enc, b_enc = _init_linear(ks[0], D_IN, D_HID)
    w_mu, b_mu = _init_linear(ks[1], D_HID, D_LAT)
    w_dec, b_dec = _init_linear(ks[2], D_LAT, D_HID)
    w_mean, b_mean = _init_linear(ks[3], D_HID, D_IN)
    w_disp, b_disp = _init_linear(ks[4], D_HID, D_IN)
    w_pi, b_pi = _init_linear(ks[5], D_HID, D_IN)
    return dict(w_enc=w_enc, b_enc=b_enc, w_mu=w_mu, b_mu=b_mu,
                w_dec=w_dec, b_dec=b_dec, w_mean=w_mean, b_mean=b_mean,
                w_disp=w_disp, b_disp=b_disp, w_pi=w_pi, b_pi=b_pi)


def _reference_forward(x, p):
    # pure-JAX reference of the same forward pass (sanity check).
    h = jnp.maximum(x @ p["w_enc"] + p["b_enc"], 0.0)
    z = h @ p["w_mu"] + p["b_mu"]
    hd = jnp.maximum(z @ p["w_dec"] + p["b_dec"], 0.0)
    mean = jnp.clip(jnp.exp(hd @ p["w_mean"] + p["b_mean"]), 1e-5, 1e6)
    disp = jnp.clip(jax.nn.softplus(hd @ p["w_disp"] + p["b_disp"]), 1e-4, 1e4)
    pi = jax.nn.sigmoid(hd @ p["w_pi"] + p["b_pi"])
    return z, mean, disp, pi


if __name__ == "__main__":
    key = jax.random.PRNGKey(0)
    kx, kp = jax.random.split(key)
    x = jax.random.normal(kx, (BATCH, D_IN), jnp.float32)
    params = init_params(kp)

    fwd = jax.jit(scdbec_forward, static_argnames=("tb",))
    z, mean, disp, pi = fwd(x, params)
    jax.block_until_ready((z, mean, disp, pi))

    # sanity check vs pure-JAX reference (approx reciprocal -> slightly looser tol)
    z_r, mean_r, disp_r, pi_r = _reference_forward(x, params)
    for a, b in ((z, z_r), (mean, mean_r), (disp, disp_r), (pi, pi_r)):
        assert a.shape == b.shape
        assert jnp.allclose(a, b, atol=2e-3, rtol=2e-3), "mismatch vs reference"

    # TODO(synk): fit()/generate_P/generate_Q and the KL/MMD/ZINB losses are
    # training-time utilities (sklearn/numpy + optimizer loop), not part of
    # forward(); not implemented as kernels.
    print("KERNEL_OK")
</pallas_src>

<mosaic_0001>
module attributes {stable_mosaic.version = 11 : i64} {
  func.func @scdbec_fwd_kernel(%arg0: i32, %arg1: memref<16x200xf32, #tpu.memory_space<vmem>>, %arg2: memref<200x32xf32, #tpu.memory_space<vmem>>, %arg3: memref<1x32xf32, #tpu.memory_space<vmem>>, %arg4: memref<32x16xf32, #tpu.memory_space<vmem>>, %arg5: memref<1x16xf32, #tpu.memory_space<vmem>>, %arg6: memref<16x32xf32, #tpu.memory_space<vmem>>, %arg7: memref<1x32xf32, #tpu.memory_space<vmem>>, %arg8: memref<32x768xf32, #tpu.memory_space<vmem>>, %arg9: memref<1x768xf32, #tpu.memory_space<vmem>>, %arg10: memref<16x16xf32, #tpu.memory_space<vmem>>, %arg11: memref<16x200xf32, #tpu.memory_space<vmem>>, %arg12: memref<16x200xf32, #tpu.memory_space<vmem>>, %arg13: memref<16x200xf32, #tpu.memory_space<vmem>>) attributes {dimension_semantics = [#tpu.dimension_semantics<parallel>], iteration_bounds = array<i64: 1>, scalar_prefetch = 0 : i64, scratch_operands = 0 : i64, tpu.core_type = #tpu.core_type<tc>, window_params = [{transform_indices = @transform_0, window_bounds = array<i64: 16, 200>}, {pipeline_mode = #tpu.pipeline_mode<synchronous>, transform_indices = @transform_1, window_bounds = array<i64: 200, 32>}, {pipeline_mode = #tpu.pipeline_mode<synchronous>, transform_indices = @transform_2, window_bounds = array<i64: 1, 32>}, {pipeline_mode = #tpu.pipeline_mode<synchronous>, transform_indices = @transform_3, window_bounds = array<i64: 32, 16>}, {pipeline_mode = #tpu.pipeline_mode<synchronous>, transform_indices = @transform_4, window_bounds = array<i64: 1, 16>}, {pipeline_mode = #tpu.pipeline_mode<synchronous>, transform_indices = @transform_5, window_bounds = array<i64: 16, 32>}, {pipeline_mode = #tpu.pipeline_mode<synchronous>, transform_indices = @transform_6, window_bounds = array<i64: 1, 32>}, {pipeline_mode = #tpu.pipeline_mode<synchronous>, transform_indices = @transform_7, window_bounds = array<i64: 32, 768>}, {pipeline_mode = #tpu.pipeline_mode<synchronous>, transform_indices = @transform_8, window_bounds = array<i64: 1, 768>}, {transform_indices = @transform_9, window_bounds = array<i64: 16, 16>}, {transform_indices = @transform_10, window_bounds = array<i64: 16, 200>}, {transform_indices = @transform_11, window_bounds = array<i64: 16, 200>}, {transform_indices = @transform_12, window_bounds = array<i64: 16, 200>}]} {
    %c0 = arith.constant 0 : index
    %c0_0 = arith.constant 0 : index
    %0 = vector.load %arg1[%c0, %c0_0] : memref<16x200xf32, #tpu.memory_space<vmem>>, vector<16x200xf32>
    %c0_1 = arith.constant 0 : index
    %c0_2 = arith.constant 0 : index
    %1 = vector.load %arg2[%c0_1, %c0_2] : memref<200x32xf32, #tpu.memory_space<vmem>>, vector<200x32xf32>
    %cst = arith.constant dense<0.000000e+00> : vector<16x32xf32>
    %2 = tpu.matmul %0, %1, %cst {dimension_numbers = #tpu.dot_dimension_numbers<[1], [0], [0], [1], [0, 0, 1, 1], [], []>} : vector<16x200xf32>, vector<200x32xf32>, vector<16x32xf32> -> vector<16x32xf32>
    %c0_3 = arith.constant 0 : index
    %c0_4 = arith.constant 0 : index
    %3 = vector.load %arg3[%c0_3, %c0_4] : memref<1x32xf32, #tpu.memory_space<vmem>>, vector<1x32xf32>
    %4 = vector.broadcast %3 : vector<1x32xf32> to vector<16x32xf32>
    %5 = arith.addf %2, %4 : vector<16x32xf32>
    %cst_5 = arith.constant 0.000000e+00 : f32
    %6 = vector.broadcast %cst_5 : f32 to vector<16x32xf32>
    %7 = arith.maximumf %5, %6 : vector<16x32xf32>
    %c0_6 = arith.constant 0 : index
    %c0_7 = arith.constant 0 : index
    %8 = vector.load %arg4[%c0_6, %c0_7] : memref<32x16xf32, #tpu.memory_space<vmem>>, vector<32x16xf32>
    %cst_8 = arith.constant dense<0.000000e+00> : vector<16x16xf32>
    %9 = tpu.matmul %7, %8, %cst_8 {dimension_numbers = #tpu.dot_dimension_numbers<[1], [0], [0], [1], [0, 0, 1, 1], [], []>} : vector<16x32xf32>, vector<32x16xf32>, vector<16x16xf32> -> vector<16x16xf32>
    %c0_9 = arith.constant 0 : index
    %c0_10 = arith.constant 0 : index
    %10 = vector.load %arg5[%c0_9, %c0_10] : memref<1x16xf32, #tpu.memory_space<vmem>>, vector<1x16xf32>
    %11 = vector.broadcast %10 : vector<1x16xf32> to vector<16x16xf32>
    %12 = arith.addf %9, %11 : vector<16x16xf32>
    %c0_11 = arith.constant 0 : index
    %c0_12 = arith.constant 0 : index
    %13 = vector.load %arg10[%c0_11, %c0_12] : memref<16x16xf32, #tpu.memory_space<vmem>>, vector<16x16xf32>
    tpu.vector_store %arg10[%c0_11, %c0_12], %12 {strides = array<i32>} : memref<16x16xf32, #tpu.memory_space<vmem>>, vector<16x16xf32>,
    %c0_13 = arith.constant 0 : index
    %c0_14 = arith.constant 0 : index
    %14 = vector.load %arg6[%c0_13, %c0_14] : memref<16x32xf32, #tpu.memory_space<vmem>>, vector<16x32xf32>
    %cst_15 = arith.constant dense<0.000000e+00> : vector<16x32xf32>
    %15 = tpu.matmul %12, %14, %cst_15 {dimension_numbers = #tpu.dot_dimension_numbers<[1], [0], [0], [1], [0, 0, 1, 1], [], []>} : vector<16x16xf32>, vector<16x32xf32>, vector<16x32xf32> -> vector<16x32xf32>
    %c0_16 = arith.constant 0 : index
    %c0_17 = arith.constant 0 : index
    %16 = vector.load %arg7[%c0_16, %c0_17] : memref<1x32xf32, #tpu.memory_space<vmem>>, vector<1x32xf32>
    %17 = vector.broadcast %16 : vector<1x32xf32> to vector<16x32xf32>
    %18 = arith.addf %15, %17 : vector<16x32xf32>
    %cst_18 = arith.constant 0.000000e+00 : f32
    %19 = vector.broadcast %cst_18 : f32 to vector<16x32xf32>
    %20 = arith.maximumf %18, %19 : vector<16x32xf32>
    %c0_19 = arith.constant 0 : index
    %c0_20 = arith.constant 0 : index
    %21 = vector.load %arg8[%c0_19, %c0_20] : memref<32x768xf32, #tpu.memory_space<vmem>>, vector<32x768xf32>
    %cst_21 = arith.constant dense<0.000000e+00> : vector<16x768xf32>
    %22 = tpu.matmul %20, %21, %cst_21 {dimension_numbers = #tpu.dot_dimension_numbers<[1], [0], [0], [1], [0, 0, 1, 1], [], []>} : vector<16x32xf32>, vector<32x768xf32>, vector<16x768xf32> -> vector<16x768xf32>
    %c0_22 = arith.constant 0 : index
    %c0_23 = arith.constant 0 : index
    %23 = vector.load %arg9[%c0_22, %c0_23] : memref<1x768xf32, #tpu.memory_space<vmem>>, vector<1x768xf32>
    %24 = vector.broadcast %23 : vector<1x768xf32> to vector<16x768xf32>
    %25 = arith.addf %22, %24 : vector<16x768xf32>
    %26 = vector.extract_strided_slice %25 {offsets = [0, 0], sizes = [16, 200], strides = [1, 1]} : vector<16x768xf32> to vector<16x200xf32>
    %27 = vector.extract_strided_slice %25 {offsets = [0, 256], sizes = [16, 200], strides = [1, 1]} : vector<16x768xf32> to vector<16x200xf32>
    %28 = vector.extract_strided_slice %25 {offsets = [0, 512], sizes = [16, 200], strides = [1, 1]} : vector<16x768xf32> to vector<16x200xf32>
    %29 = math.exp %26 : vector<16x200xf32>
    %cst_24 = arith.constant 9.99999974E-6 : f32
    %cst_25 = arith.constant 1.000000e+06 : f32
    %30 = vector.broadcast %cst_24 : f32 to vector<16x200xf32>
    %31 = arith.maximumf %30, %29 : vector<16x200xf32>
    %32 = vector.broadcast %cst_25 : f32 to vector<16x200xf32>
    %33 = arith.minimumf %32, %31 : vector<16x200xf32>
    %c0_26 = arith.constant 0 : index
    %c0_27 = arith.constant 0 : index
    %34 = vector.load %arg11[%c0_26, %c0_27] : memref<16x200xf32, #tpu.memory_space<vmem>>, vector<16x200xf32>
    tpu.vector_store %arg11[%c0_26, %c0_27], %33 {strides = array<i32>} : memref<16x200xf32, #tpu.memory_space<vmem>>, vector<16x200xf32>,
    %cst_28 = arith.constant 0.000000e+00 : f32
    %35 = vector.broadcast %cst_28 : f32 to vector<16x200xf32>
    %36 = arith.maximumf %27, %35 : vector<16x200xf32>
    %37 = math.absf %27 : vector<16x200xf32>
    %cst_29 = arith.constant 0.000000e+00 : f32
    %38 = vector.broadcast %cst_29 : f32 to vector<16x200xf32>
    %39 = arith.subf %38, %37 : vector<16x200xf32>
    %40 = math.exp %39 : vector<16x200xf32>
    %41 = math.log1p %40 : vector<16x200xf32>
    %42 = arith.addf %36, %41 : vector<16x200xf32>
    %cst_30 = arith.constant 9.99999974E-5 : f32
    %cst_31 = arith.constant 1.000000e+04 : f32
    %43 = vector.broadcast %cst_30 : f32 to vector<16x200xf32>
    %44 = arith.maximumf %43, %42 : vector<16x200xf32>
    %45 = vector.broadcast %cst_31 : f32 to vector<16x200xf32>
    %46 = arith.minimumf %45, %44 : vector<16x200xf32>
    %c0_32 = arith.constant 0 : index
    %c0_33 = arith.constant 0 : index
    %47 = vector.load %arg12[%c0_32, %c0_33] : memref<16x200xf32, #tpu.memory_space<vmem>>, vector<16x200xf32>
    tpu.vector_store %arg12[%c0_32, %c0_33], %46 {strides = array<i32>} : memref<16x200xf32, #tpu.memory_space<vmem>>, vector<16x200xf32>,
    %cst_34 = arith.constant 0.000000e+00 : f32
    %48 = vector.broadcast %cst_34 : f32 to vector<16x200xf32>
    %49 = arith.subf %48, %28 : vector<16x200xf32>
    %50 = math.exp %49 : vector<16x200xf32>
    %cst_35 = arith.constant 1.000000e+00 : f32
    %51 = vector.broadcast %cst_35 : f32 to vector<16x200xf32>
    %52 = arith.addf %51, %50 : vector<16x200xf32>
    %53 = tpu.reciprocal %52 {approx = true} : vector<16x200xf32> -> vector<16x200xf32>
    %c0_36 = arith.constant 0 : index
    %c0_37 = arith.constant 0 : index
    %54 = vector.load %arg13[%c0_36, %c0_37] : memref<16x200xf32, #tpu.memory_space<vmem>>, vector<16x200xf32>
    tpu.vector_store %arg13[%c0_36, %c0_37], %53 {strides = array<i32>} : memref<16x200xf32, #tpu.memory_space<vmem>>, vector<16x200xf32>,
    return
  }
  func.func @transform_0(%arg0: i32) -> (i32, i32) {
    %c0_i32 = arith.constant 0 : i32
    %c0_i32_0 = arith.constant 0 : i32
    return %arg0, %c0_i32 : i32, i32
  }
  func.func @transform_1(%arg0: i32) -> (i32, i32) {
    %c0_i32 = arith.constant 0 : i32
    %c0_i32_0 = arith.constant 0 : i32
    %c0_i32_1 = arith.constant 0 : i32
    return %c0_i32, %c0_i32_0 : i32, i32
  }
  func.func @transform_2(%arg0: i32) -> (i32, i32) {
    %c0_i32 = arith.constant 0 : i32
    %c0_i32_0 = arith.constant 0 : i32
    %c0_i32_1 = arith.constant 0 : i32
    return %c0_i32, %c0_i32_0 : i32, i32
  }
  func.func @transform_3(%arg0: i32) -> (i32, i32) {
    %c0_i32 = arith.constant 0 : i32
    %c0_i32_0 = arith.constant 0 : i32
    %c0_i32_1 = arith.constant 0 : i32
    return %c0_i32, %c0_i32_0 : i32, i32
  }
  func.func @transform_4(%arg0: i32) -> (i32, i32) {
    %c0_i32 = arith.constant 0 : i32
    %c0_i32_0 = arith.constant 0 : i32
    %c0_i32_1 = arith.constant 0 : i32
    return %c0_i32, %c0_i32_0 : i32, i32
  }
  func.func @transform_5(%arg0: i32) -> (i32, i32) {
    %c0_i32 = arith.constant 0 : i32
    %c0_i32_0 = arith.constant 0 : i32
    %c0_i32_1 = arith.constant 0 : i32
    return %c0_i32, %c0_i32_0 : i32, i32
  }
  func.func @transform_6(%arg0: i32) -> (i32, i32) {
    %c0_i32 = arith.constant 0 : i32
    %c0_i32_0 = arith.constant 0 : i32
    %c0_i32_1 = arith.constant 0 : i32
    return %c0_i32, %c0_i32_0 : i32, i32
  }
  func.func @transform_7(%arg0: i32) -> (i32, i32) {
    %c0_i32 = arith.constant 0 : i32
    %c0_i32_0 = arith.constant 0 : i32
    %c0_i32_1 = arith.constant 0 : i32
    return %c0_i32, %c0_i32_0 : i32, i32
  }
  func.func @transform_8(%arg0: i32) -> (i32, i32) {
    %c0_i32 = arith.constant 0 : i32
    %c0_i32_0 = arith.constant 0 : i32
    %c0_i32_1 = arith.constant 0 : i32
    return %c0_i32, %c0_i32_0 : i32, i32
  }
  func.func @transform_9(%arg0: i32) -> (i32, i32) {
    %c0_i32 = arith.constant 0 : i32
    %c0_i32_0 = arith.constant 0 : i32
    return %arg0, %c0_i32 : i32, i32
  }
  func.func @transform_10(%arg0: i32) -> (i32, i32) {
    %c0_i32 = arith.constant 0 : i32
    %c0_i32_0 = arith.constant 0 : i32
    return %arg0, %c0_i32 : i32, i32
  }
  func.func @transform_11(%arg0: i32) -> (i32, i32) {
    %c0_i32 = arith.constant 0 : i32
    %c0_i32_0 = arith.constant 0 : i32
    return %arg0, %c0_i32 : i32, i32
  }
  func.func @transform_12(%arg0: i32) -> (i32, i32) {
    %c0_i32 = arith.constant 0 : i32
    %c0_i32_0 = arith.constant 0 : i32
    return %arg0, %c0_i32 : i32, i32
  }
}

</mosaic_0001>

<llo_original>
// kernel: scdbec_forward.1
$region0: #{scdbec_forward.1}
  #allocation0 [shape = 'u32[]', space=smem, size = 0x4, offset = 0x4, fixed_abs, tag = 'smem constant byte address 0x4 - core index']
  #allocation1 [shape = 'u32[144,128]{1,0:T(1,128)}', space=vmem, size = 0x12000, scoped, tag = 'internal scratch']
  %s0 = inlined_call_operand.vmem [shape: f32[16,200], index: 0, kind: input, shape index: {}]
  %s1 = inlined_call_operand.vmem [shape: f32[200,32], index: 1, kind: input, shape index: {}]
  %s2 = inlined_call_operand.vmem [shape: f32[1,32], index: 2, kind: input, shape index: {}]
  %s3 = inlined_call_operand.vmem [shape: f32[32,16], index: 3, kind: input, shape index: {}]
  %s4 = inlined_call_operand.vmem [shape: f32[1,16], index: 4, kind: input, shape index: {}]
  %s5 = inlined_call_operand.vmem [shape: f32[16,32], index: 5, kind: input, shape index: {}]
  %s6 = inlined_call_operand.vmem [shape: f32[1,32], index: 6, kind: input, shape index: {}]
  %s7 = inlined_call_operand.vmem [shape: f32[32,768], index: 7, kind: input, shape index: {}]
  %s8 = inlined_call_operand.vmem [shape: f32[1,768], index: 8, kind: input, shape index: {}]
  %s9 = inlined_call_operand.hbm [shape: f32[16,16], index: 9, kind: output, shape index: {0}]
  %s10 = inlined_call_operand.hbm [shape: f32[16,200], index: 10, kind: output, shape index: {1}]
  %s11 = inlined_call_operand.hbm [shape: f32[16,200], index: 11, kind: output, shape index: {2}]
  %s12 = inlined_call_operand.hbm [shape: f32[16,200], index: 12, kind: output, shape index: {3}]
  %13 = xla_tuple %s9, %s10, %s11, %s12
  %s14 = sld [smem:[#allocation0]]
  $region70: #{scdbec_forward.1} parent=0
    _
  %s16 = ssub.s32 1, %s14
  %s17 = scalar_select 0, %s16, %s14
  $region1: #{scdbec_forward.1} parent=0
    #allocation2 [shape = 'u8[8192]{0}', space=vmem, size = 0x2000, scoped, tag = 'output window, operand 0, single buffered']
    #allocation3 [shape = 's32[1]{0}', space=sflag, size = 0x4, scoped, tag = 'scoped memory for scdbec_forward.1']
    #allocation4 [shape = 'u8[16384]{0}', space=vmem, size = 0x4000, scoped, tag = 'output window, operand 1, single buffered']
    #allocation5 [shape = 's32[1]{0}', space=sflag, size = 0x4, scoped, tag = 'scoped memory for scdbec_forward.1']
    #allocation6 [shape = 'u8[16384]{0}', space=vmem, size = 0x4000, scoped, tag = 'output window, operand 2, single buffered']
    #allocation7 [shape = 'u8[16384]{0}', space=vmem, size = 0x4000, scoped, tag = 'output window, operand 3, single buffered']
    #allocation8 [shape = 's32[1]{0}', space=sflag, size = 0x4, scoped, tag = 'scoped memory for scdbec_forward.1']
    %18 = vsyncpa [#allocation3], 0
    %19 = vsyncpa [#allocation5], 0
    %20 = vsyncpa [#allocation8], 0
    // Predicated region
    $region2: #{scdbec_forward.1} parent=1 // pred_check
      _
    $region3: #{scdbec_forward.1} parent=1 // pred_check_branch
      %22 = sbr.rel (0) target = $region5
    $region4: #{scdbec_forward.1} parent=1 // pred_region
      _
    $region5: #{scdbec_forward.1} parent=1 // pred_fallthru
      _
    // Predicated region
    $region6: #{scdbec_forward.1} parent=1 // pred_check
      _
    $region7: #{scdbec_forward.1} parent=1 // pred_check_branch
      %24 = sbr.rel (0) target = $region9
    $region8: #{scdbec_forward.1} parent=1 // pred_region
      _
    $region9: #{scdbec_forward.1} parent=1 // pred_fallthru
      _
    // Predicated region
    $region10: #{scdbec_forward.1} parent=1 // pred_check
      _
    $region11: #{scdbec_forward.1} parent=1 // pred_check_branch
      %26 = sbr.rel (0) target = $region13
    $region12: #{scdbec_forward.1} parent=1 // pred_region
      _
    $region13: #{scdbec_forward.1} parent=1 // pred_fallthru
      _
    // Predicated region
    $region14: #{scdbec_forward.1} parent=1 // pred_check
      _
    $region15: #{scdbec_forward.1} parent=1 // pred_check_branch
      %28 = sbr.rel (0) target = $region17
    $region16: #{scdbec_forward.1} parent=1 // pred_region
      _
    $region17: #{scdbec_forward.1} parent=1 // pred_fallthru
      _
    // Predicated region
    $region18: #{scdbec_forward.1} parent=1 // pred_check
      _
    $region19: #{scdbec_forward.1} parent=1 // pred_check_branch
      %30 = sbr.rel (0) target = $region21
    $region20: #{scdbec_forward.1} parent=1 // pred_region
      _
    $region21: #{scdbec_forward.1} parent=1 // pred_fallthru
      _
    // Predicated region
    $region22: #{scdbec_forward.1} parent=1 // pred_check
      _
    $region23: #{scdbec_forward.1} parent=1 // pred_check_branch
      %32 = sbr.rel (0) target = $region25
    $region24: #{scdbec_forward.1} parent=1 // pred_region
      _
    $region25: #{scdbec_forward.1} parent=1 // pred_fallthru
      _
    // Predicated region
    $region26: #{scdbec_forward.1} parent=1 // pred_check
      _
    $region27: #{scdbec_forward.1} parent=1 // pred_check_branch
      %34 = sbr.rel (0) target = $region29
    $region28: #{scdbec_forward.1} parent=1 // pred_region
      _
    $region29: #{scdbec_forward.1} parent=1 // pred_fallthru
      _
    // Predicated region
    $region30: #{scdbec_forward.1} parent=1 // pred_check
      _
    $region31: #{scdbec_forward.1} parent=1 // pred_check_branch
      %36 = sbr.rel (0) target = $region33
    $region32: #{scdbec_forward.1} parent=1 // pred_region
      _
    $region33: #{scdbec_forward.1} parent=1 // pred_fallthru
      _
    // Predicated region
    $region34: #{scdbec_forward.1} parent=1 // pred_check
      _
    $region35: #{scdbec_forward.1} parent=1 // pred_check_branch
      %38 = sbr.rel (0) target = $region37
    $region36: #{scdbec_forward.1} parent=1 // pred_region
      _
    $region37: #{scdbec_forward.1} parent=1 // pred_fallthru
      _
    %v39 = vld [vmem:[%s0] sm:$0xff]
    %v40 = vld [vmem:[%s0 + $0x8] sm:$0xff]
    %v41 = vld [vmem:[%s0 + $0x10] sm:$0xff]
    %v42 = vld [vmem:[%s0 + $0x18] sm:$0xff]
    %v43 = vld [vmem:[%s1] sm:$0xff]
    %v44 = vld [vmem:[%s1 + $0x8] sm:$0xff]
    %v45 = vld [vmem:[%s1 + $0x10] sm:$0xff]
    %v46 = vld [vmem:[%s1 + $0x18] sm:$0xff]
    %v47 = vld [vmem:[%s1 + $0x20] sm:$0xff]
    %v48 = vld [vmem:[%s1 + $0x28] sm:$0xff]
    %v49 = vld [vmem:[%s1 + $0x30] sm:$0xff]
    %v50 = vld [vmem:[%s1 + $0x38] sm:$0xff]
    %v51 = vld [vmem:[%s1 + $0x40] sm:$0xff]
    %v52 = vld [vmem:[%s1 + $0x48] sm:$0xff]
    %v53 = vld [vmem:[%s1 + $0x50] sm:$0xff]
    %v54 = vld [vmem:[%s1 + $0x58] sm:$0xff]
    %v55 = vld [vmem:[%s1 + $0x60] sm:$0xff]
    %v56 = vld [vmem:[%s1 + $0x68] sm:$0xff]
    %v57 = vld [vmem:[%s1 + $0x70] sm:$0xff]
    %v58 = vld [vmem:[%s1 + $0x78] sm:$0xff]
    %v59 = vld [vmem:[%s1 + $0x80] sm:$0xff]
    %v60 = vld [vmem:[%s1 + $0x88] sm:$0xff]
    %v61 = vld [vmem:[%s1 + $0x90] sm:$0xff]
    %v62 = vld [vmem:[%s1 + $0x98] sm:$0xff]
    %v63 = vld [vmem:[%s1 + $0xa0] sm:$0xff]
    %v64 = vld [vmem:[%s1 + $0xa8] sm:$0xff]
    %v65 = vld [vmem:[%s1 + $0xb0] sm:$0xff]
    %v66 = vld [vmem:[%s1 + $0xb8] sm:$0xff]
    %v67 = vld [vmem:[%s1 + $0xc0] sm:$0xff]
    %v68 = vld [vmem:[%s2] sm:$0x1]
    %v70 = vlaneseq
    %v71 = vshrl.u32 %v70, 7
    %v72 = vsub.s32 0, %v71
    %v73 = vrot.slane %v68, %v72
    %vm75 = vcmask 588800
    %v77 = vsel %vm75, %v40, 0
    %v80 = vsel %vm75, %v42, 0
    %82 = vmatprep.subr.mxu0 0.0
    %83 = vmatpush1.msra.mxu0 %v58
    %84 = vmatprep.subr.mxu0 0.0
    %85 = vmatpush1.msra.mxu0 %v57
    %86 = vmatprep.subr.mxu0 0.0
    %87 = vmatpush1.msra.mxu0 %v56
    %88 = vmatprep.subr.mxu0 0.0
    %89 = vmatpush1.msra.mxu0 %v55
    %90 = vmatprep.subr.mxu0 0.0
    %91 = vmatpush1.msra.mxu0 %v54
    %92 = vmatprep.subr.mxu0 0.0
    %93 = vmatpush1.msra.mxu0 %v53
    %94 = vmatprep.subr.mxu0 0.0
    %95 = vmatpush1.msra.mxu0 %v52
    %96 = vmatprep.subr.mxu0 0.0
    %97 = vmatpush1.msra.mxu0 %v51
    %98 = vmatprep.subr.mxu0 0.0
    %99 = vmatpush1.msra.mxu0 %v50
    %100 = vmatprep.subr.mxu0 0.0
    %101 = vmatpush1.msra.mxu0 %v49
    %102 = vmatprep.subr.mxu0 0.0
    %103 = vmatpush1.msra.mxu0 %v48
    %104 = vmatprep.subr.mxu0 0.0
    %105 = vmatpush1.msra.mxu0 %v47
    %106 = vmatprep.subr.mxu0 0.0
    %107 = vmatpush1.msra.mxu0 %v46
    %108 = vmatprep.subr.mxu0 0.0
    %109 = vmatpush1.msra.mxu0 %v45
    %110 = vmatprep.subr.mxu0 0.0
    %111 = vmatpush1.msra.mxu0 %v44
    %112 = vmatprep.subr.mxu0 0.0
    %113 = vmatpush1.msra.mxu0 %v43
    %114 = vmatprep.subr.mxu0 0.0
    %115 = vmatpush2.msra.mxu0 0.0
    %116 = vmatprep.subr.mxu0 0.0
    %117 = vmatpush2.msra.mxu0 0.0
    %118 = vmatprep.subr.mxu0 0.0
    %119 = vmatpush2.msra.mxu0 0.0
    %120 = vmatprep.subr.mxu0 0.0
    %121 = vmatpush2.msra.mxu0 0.0
    %122 = vmatprep.subr.mxu0 0.0
    %123 = vmatpush2.msra.mxu0 0.0
    %124 = vmatprep.subr.mxu0 0.0
    %125 = vmatpush2.msra.mxu0 0.0
    %126 = vmatprep.subr.mxu0 0.0
    %127 = vmatpush2.msra.mxu0 0.0
    %128 = vmatprep.subr.mxu0 0.0
    %129 = vmatpush2.msra.mxu0 %v67
    %130 = vmatprep.subr.mxu0 0.0
    %131 = vmatpush2.msra.mxu0 %v66
    %132 = vmatprep.subr.mxu0 0.0
    %133 = vmatpush2.msra.mxu0 %v65
    %134 = vmatprep.subr.mxu0 0.0
    %135 = vmatpush2.msra.mxu0 %v64
    %136 = vmatprep.subr.mxu0 0.0
    %137 = vmatpush2.msra.mxu0 %v63
    %138 = vmatprep.subr.mxu0 0.0
    %139 = vmatpush2.msra.mxu0 %v62
    %140 = vmatprep.subr.mxu0 0.0
    %141 = vmatpush2.msra.mxu0 %v61
    %142 = vmatprep.subr.mxu0 0.0
    %143 = vmatpush2.msra.mxu0 %v60
    %144 = vmatprep.subr.mxu0 0.0
    %145 = vmatpush2.msra.mxu0 %v59
    %146 = vmatprep.mubr.f32.mxu0 %v77
    %147 = vmatmul.mubr.f32.gmra.mxu0 %v39
    %v148 = vpop.f32.mrf.mxu0
    %v149 = vadd.f32 %v73, %v148
    %v150 = vpop.f32.mrf.mxu0
    %151 = vmatprep.mubr.f32.mxu0 %v80
    %152 = vmatmul.mubr.f32.gmra.mxu0 %v41
    %v153 = vpop.f32.mrf.mxu0
    %v154 = vadd.f32 %v73, %v153
    %v155 = vpop.f32.mrf.mxu0
    %156 = vdwg.mxu0
    %v157 = vmax.f32 %v149, 0.0
    %v158 = vmax.f32 %v154, 0.0
    %v159 = vld [vmem:[%s3] sm:$0xff]
    %v160 = vld [vmem:[%s3 + $0x8] sm:$0xff]
    %v161 = vld [vmem:[%s3 + $0x10] sm:$0xff]
    %v162 = vld [vmem:[%s3 + $0x18] sm:$0xff]
    %v163 = vld [vmem:[%s4] sm:$0x1]
    %v165 = vlaneseq
    %v166 = vshrl.u32 %v165, 7
    %v167 = vsub.s32 0, %v166
    %v168 = vrot.slane %v163, %v167
    %vm170 = vcmask 261120
    %v172 = vsel %vm170, %v157, 0
    %v175 = vsel %vm170, %v158, 0
    %177 = vmatprep.subr.mxu0 0.0
    %178 = vmatpush1.msra.mxu0 0.0
    %179 = vmatprep.subr.mxu0 0.0
    %180 = vmatpush1.msra.mxu0 0.0
    %181 = vmatprep.subr.mxu0 0.0
    %182 = vmatpush1.msra.mxu0 0.0
    %183 = vmatprep.subr.mxu0 0.0
    %184 = vmatpush1.msra.mxu0 0.0
    %185 = vmatprep.subr.mxu0 0.0
    %186 = vmatpush1.msra.mxu0 0.0
    %187 = vmatprep.subr.mxu0 0.0
    %188 = vmatpush1.msra.mxu0 0.0
    %189 = vmatprep.subr.mxu0 0.0
    %190 = vmatpush1.msra.mxu0 0.0
    %191 = vmatprep.subr.mxu0 0.0
    %192 = vmatpush1.msra.mxu0 0.0
    %193 = vmatprep.subr.mxu0 0.0
    %194 = vmatpush1.msra.mxu0 0.0
    %195 = vmatprep.subr.mxu0 0.0
    %196 = vmatpush1.msra.mxu0 0.0
    %197 = vmatprep.subr.mxu0 0.0
    %198 = vmatpush1.msra.mxu0 0.0
    %199 = vmatprep.subr.mxu0 0.0
    %200 = vmatpush1.msra.mxu0 0.0
    %201 = vmatprep.subr.mxu0 0.0
    %202 = vmatpush1.msra.mxu0 %v162
    %203 = vmatprep.subr.mxu0 0.0
    %204 = vmatpush1.msra.mxu0 %v161
    %205 = vmatprep.subr.mxu0 0.0
    %206 = vmatpush1.msra.mxu0 %v160
    %207 = vmatprep.subr.mxu0 0.0
    %208 = vmatpush1.msra.mxu0 %v159
    %209 = vmatprep.subr.mxu0 0.0
    %210 = vmatpush2.msra.mxu0 0.0
    %211 = vmatprep.subr.mxu0 0.0
    %212 = vmatpush2.msra.mxu0 0.0
    %213 = vmatprep.subr.mxu0 0.0
    %214 = vmatpush2.msra.mxu0 0.0
    %215 = vmatprep.subr.mxu0 0.0
    %216 = vmatpush2.msra.mxu0 0.0
    %217 = vmatprep.subr.mxu0 0.0
    %218 = vmatpush2.msra.mxu0 0.0
    %219 = vmatprep.subr.mxu0 0.0
    %220 = vmatpush2.msra.mxu0 0.0
    %221 = vmatprep.subr.mxu0 0.0
    %222 = vmatpush2.msra.mxu0 0.0
    %223 = vmatprep.subr.mxu0 0.0
    %224 = vmatpush2.msra.mxu0 0.0
    %225 = vmatprep.subr.mxu0 0.0
    %226 = vmatpush2.msra.mxu0 0.0
    %227 = vmatprep.subr.mxu0 0.0
    %228 = vmatpush2.msra.mxu0 0.0
    %229 = vmatprep.subr.mxu0 0.0
    %230 = vmatpush2.msra.mxu0 0.0
    %231 = vmatprep.subr.mxu0 0.0
    %232 = vmatpush2.msra.mxu0 0.0
    %233 = vmatprep.subr.mxu0 0.0
    %234 = vmatpush2.msra.mxu0 0.0
    %235 = vmatprep.subr.mxu0 0.0
    %236 = vmatpush2.msra.mxu0 0.0
    %237 = vmatprep.subr.mxu0 0.0
    %238 = vmatpush2.msra.mxu0 0.0
    %239 = vmatprep.subr.mxu0 0.0
    %240 = vmatpush2.msra.mxu0 0.0
    %241 = vmatprep.mubr.f32.mxu0 0.0
    %242 = vmatmul.mubr.f32.gmra.mxu0 %v172
    %v243 = vpop.f32.mrf.mxu0
    %v244 = vadd.f32 %v168, %v243
    %v245 = vpop.f32.mrf.mxu0
    %246 = vmatprep.mubr.f32.mxu0 0.0
    %247 = vmatmul.mubr.f32.gmra.mxu0 %v175
    %v248 = vpop.f32.mrf.mxu0
    %v249 = vadd.f32 %v168, %v248
    %v250 = vpop.f32.mrf.mxu0
    %251 = vdwg.mxu0
    %vm252 = vcmask 130048
    %253 = vst.msk [vmem:[#allocation2] sm:$0xff] %vm252, %v244
    %254 = vst.msk [vmem:[#allocation2 + $0x8] sm:$0xff] %vm252, %v249
    %v255 = vld [vmem:[%s5] sm:$0xff]
    %v256 = vld [vmem:[%s5 + $0x8] sm:$0xff]
    %v257 = vld [vmem:[%s6] sm:$0x1]
    %v259 = vlaneseq
    %v260 = vshrl.u32 %v259, 7
    %v261 = vsub.s32 0, %v260
    %v262 = vrot.slane %v257, %v261
    %v265 = vsel %vm252, %v244, 0
    %v268 = vsel %vm252, %v249, 0
    %270 = vmatprep.subr.mxu0 0.0
    %271 = vmatpush1.msra.mxu0 0.0
    %272 = vmatprep.subr.mxu0 0.0
    %273 = vmatpush1.msra.mxu0 0.0
    %274 = vmatprep.subr.mxu0 0.0
    %275 = vmatpush1.msra.mxu0 0.0
    %276 = vmatprep.subr.mxu0 0.0
    %277 = vmatpush1.msra.mxu0 0.0
    %278 = vmatprep.subr.mxu0 0.0
    %279 = vmatpush1.msra.mxu0 0.0
    %280 = vmatprep.subr.mxu0 0.0
    %281 = vmatpush1.msra.mxu0 0.0
    %282 = vmatprep.subr.mxu0 0.0
    %283 = vmatpush1.msra.mxu0 0.0
    %284 = vmatprep.subr.mxu0 0.0
    %285 = vmatpush1.msra.mxu0 0.0
    %286 = vmatprep.subr.mxu0 0.0
    %287 = vmatpush1.msra.mxu0 0.0
    %288 = vmatprep.subr.mxu0 0.0
    %289 = vmatpush1.msra.mxu0 0.0
    %290 = vmatprep.subr.mxu0 0.0
    %291 = vmatpush1.msra.mxu0 0.0
    %292 = vmatprep.subr.mxu0 0.0
    %293 = vmatpush1.msra.mxu0 0.0
    %294 = vmatprep.subr.mxu0 0.0
    %295 = vmatpush1.msra.mxu0 0.0
    %296 = vmatprep.subr.mxu0 0.0
    %297 = vmatpush1.msra.mxu0 0.0
    %298 = vmatprep.subr.mxu0 0.0
    %299 = vmatpush1.msra.mxu0 %v256
    %300 = vmatprep.subr.mxu0 0.0
    %301 = vmatpush1.msra.mxu0 %v255
    %302 = vmatprep.subr.mxu0 0.0
    %303 = vmatpush2.msra.mxu0 0.0
    %304 = vmatprep.subr.mxu0 0.0
    %305 = vmatpush2.msra.mxu0 0.0
    %306 = vmatprep.subr.mxu0 0.0
    %307 = vmatpush2.msra.mxu0 0.0
    %308 = vmatprep.subr.mxu0 0.0
    %309 = vmatpush2.msra.mxu0 0.0
    %310 = vmatprep.subr.mxu0 0.0
    %311 = vmatpush2.msra.mxu0 0.0
    %312 = vmatprep.subr.mxu0 0.0
    %313 = vmatpush2.msra.mxu0 0.0
    %314 = vmatprep.subr.mxu0 0.0
    %315 = vmatpush2.msra.mxu0 0.0
    %316 = vmatprep.subr.mxu0 0.0
    %317 = vmatpush2.msra.mxu0 0.0
    %318 = vmatprep.subr.mxu0 0.0
    %319 = vmatpush2.msra.mxu0 0.0
    %320 = vmatprep.subr.mxu0 0.0
    %321 = vmatpush2.msra.mxu0 0.0
    %322 = vmatprep.subr.mxu0 0.0
    %323 = vmatpush2.msra.mxu0 0.0
    %324 = vmatprep.subr.mxu0 0.0
    %325 = vmatpush2.msra.mxu0 0.0
    %326 = vmatprep.subr.mxu0 0.0
    %327 = vmatpush2.msra.mxu0 0.0
    %328 = vmatprep.subr.mxu0 0.0
    %329 = vmatpush2.msra.mxu0 0.0
    %330 = vmatprep.subr.mxu0 0.0
    %331 = vmatpush2.msra.mxu0 0.0
    %332 = vmatprep.subr.mxu0 0.0
    %333 = vmatpush2.msra.mxu0 0.0
    %334 = vmatprep.mubr.f32.mxu0 0.0
    %335 = vmatmul.mubr.f32.gmra.mxu0 %v265
    %v336 = vpop.f32.mrf.mxu0
    %v337 = vadd.f32 %v262, %v336
    %v338 = vpop.f32.mrf.mxu0
    %339 = vmatprep.mubr.f32.mxu0 0.0
    %340 = vmatmul.mubr.f32.gmra.mxu0 %v268
    %v341 = vpop.f32.mrf.mxu0
    %v342 = vadd.f32 %v262, %v341
    %v343 = vpop.f32.mrf.mxu0
    %344 = vdwg.mxu0
    %v345 = vmax.f32 %v337, 0.0
    %v346 = vmax.f32 %v342, 0.0
    %v347 = vld [vmem:[%s7] sm:$0xff]
    %v348 = vld [vmem:[%s7 + $0x8] sm:$0xff]
    %v349 = vld [vmem:[%s7 + $0x10] sm:$0xff]
    %v350 = vld [vmem:[%s7 + $0x18] sm:$0xff]
    %v351 = vld [vmem:[%s7 + $0x20] sm:$0xff]
    %v352 = vld [vmem:[%s7 + $0x28] sm:$0xff]
    %v353 = vld [vmem:[%s7 + $0x30] sm:$0xff]
    %v354 = vld [vmem:[%s7 + $0x38] sm:$0xff]
    %v355 = vld [vmem:[%s7 + $0x40] sm:$0xff]
    %v356 = vld [vmem:[%s7 + $0x48] sm:$0xff]
    %v357 = vld [vmem:[%s7 + $0x50] sm:$0xff]
    %v358 = vld [vmem:[%s7 + $0x58] sm:$0xff]
    %v359 = vld [vmem:[%s7 + $0x60] sm:$0xff]
    %v360 = vld [vmem:[%s7 + $0x68] sm:$0xff]
    %v361 = vld [vmem:[%s7 + $0x70] sm:$0xff]
    %v362 = vld [vmem:[%s7 + $0x78] sm:$0xff]
    %v363 = vld [vmem:[%s7 + $0x80] sm:$0xff]
    %v364 = vld [vmem:[%s7 + $0x88] sm:$0xff]
    %v365 = vld [vmem:[%s7 + $0x90] sm:$0xff]
    %v366 = vld [vmem:[%s7 + $0x98] sm:$0xff]
    %v367 = vld [vmem:[%s7 + $0xa0] sm:$0xff]
    %v368 = vld [vmem:[%s7 + $0xa8] sm:$0xff]
    %v369 = vld [vmem:[%s7 + $0xb0] sm:$0xff]
    %v370 = vld [vmem:[%s7 + $0xb8] sm:$0xff]
    %v371 = vld [vmem:[%s8] sm:$0x3f]
    %v373 = vlaneseq
    %v374 = vshrl.u32 %v373, 7
    %v375 = vsub.s32 0, %v374
    %v376 = vrot.slane %v371, %v375
    %v377 = vlaneseq
    %v378 = vshrl.u32 %v377, 7
    %v379 = vsub.s32 1, %v378
    %v380 = vrot.slane %v371, %v379
    %v381 = vlaneseq
    %v382 = vshrl.u32 %v381, 7
    %v383 = vsub.s32 2, %v382
    %v384 = vrot.slane %v371, %v383
    %v385 = vlaneseq
    %v386 = vshrl.u32 %v385, 7
    %v387 = vsub.s32 3, %v386
    %v388 = vrot.slane %v371, %v387
    %v389 = vlaneseq
    %v390 = vshrl.u32 %v389, 7
    %v391 = vsub.s32 4, %v390
    %v392 = vrot.slane %v371, %v391
    %v393 = vlaneseq
    %v394 = vshrl.u32 %v393, 7
    %v395 = vsub.s32 5, %v394
    %v396 = vrot.slane %v371, %v395
    %v404 = vsel %vm170, %v345, 0
    %v407 = vsel %vm170, %v346, 0
    %409 = vmatprep.subr.mxu0 0.0
    %410 = vmatpush1.msra.mxu0 0.0
    %411 = vmatprep.subr.mxu0 0.0
    %412 = vmatpush1.msra.mxu0 0.0
    %413 = vmatprep.subr.mxu0 0.0
    %414 = vmatpush1.msra.mxu0 0.0
    %415 = vmatprep.subr.mxu0 0.0
    %416 = vmatpush1.msra.mxu0 0.0
    %417 = vmatprep.subr.mxu0 0.0
    %418 = vmatpush1.msra.mxu0 0.0
    %419 = vmatprep.subr.mxu0 0.0
    %420 = vmatpush1.msra.mxu0 0.0
    %421 = vmatprep.subr.mxu0 0.0
    %422 = vmatpush1.msra.mxu0 0.0
    %423 = vmatprep.subr.mxu0 0.0
    %424 = vmatpush1.msra.mxu0 0.0
    %425 = vmatprep.subr.mxu0 0.0
    %426 = vmatpush1.msra.mxu0 0.0
    %427 = vmatprep.subr.mxu0 0.0
    %428 = vmatpush1.msra.mxu0 0.0
    %429 = vmatprep.subr.mxu0 0.0
    %430 = vmatpush1.msra.mxu0 0.0
    %431 = vmatprep.subr.mxu0 0.0
    %432 = vmatpush1.msra.mxu0 0.0
    %433 = vmatprep.subr.mxu0 %v366
    %434 = vmatpush1.msra.mxu0 %v365
    %435 = vmatprep.subr.mxu0 %v360
    %436 = vmatpush1.msra.mxu0 %v359
    %437 = vmatprep.subr.mxu0 %v354
    %438 = vmatpush1.msra.mxu0 %v353
    %439 = vmatprep.subr.mxu0 %v348
    %440 = vmatpush1.msra.mxu0 %v347
    %441 = vmatprep.subr.mxu0 0.0
    %442 = vmatpush2.msra.mxu0 0.0
    %443 = vmatprep.subr.mxu0 0.0
    %444 = vmatpush2.msra.mxu0 0.0
    %445 = vmatprep.subr.mxu0 0.0
    %446 = vmatpush2.msra.mxu0 0.0
    %447 = vmatprep.subr.mxu0 0.0
    %448 = vmatpush2.msra.mxu0 0.0
    %449 = vmatprep.subr.mxu0 0.0
    %450 = vmatpush2.msra.mxu0 0.0
    %451 = vmatprep.subr.mxu0 0.0
    %452 = vmatpush2.msra.mxu0 0.0
    %453 = vmatprep.subr.mxu0 0.0
    %454 = vmatpush2.msra.mxu0 0.0
    %455 = vmatprep.subr.mxu0 0.0
    %456 = vmatpush2.msra.mxu0 0.0
    %457 = vmatprep.subr.mxu0 0.0
    %458 = vmatpush2.msra.mxu0 0.0
    %459 = vmatprep.subr.mxu0 0.0
    %460 = vmatpush2.msra.mxu0 0.0
    %461 = vmatprep.subr.mxu0 0.0
    %462 = vmatpush2.msra.mxu0 0.0
    %463 = vmatprep.subr.mxu0 0.0
    %464 = vmatpush2.msra.mxu0 0.0
    %465 = vmatprep.subr.mxu0 0.0
    %466 = vmatpush2.msra.mxu0 0.0
    %467 = vmatprep.subr.mxu0 0.0
    %468 = vmatpush2.msra.mxu0 0.0
    %469 = vmatprep.subr.mxu0 0.0
    %470 = vmatpush2.msra.mxu0 0.0
    %471 = vmatprep.subr.mxu0 0.0
    %472 = vmatpush2.msra.mxu0 0.0
    %473 = vmatprep.mubr.f32.mxu0 0.0
    %474 = vmatmul.mubr.f32.gmra.mxu0 %v404
    %v475 = vpop.f32.mrf.mxu0
    %v476 = vadd.f32 %v376, %v475
    %v477 = vpop.f32.mrf.mxu0
    %v478 = vadd.f32 %v380, %v477
    %479 = vmatprep.mubr.f32.mxu0 0.0
    %480 = vmatmul.mubr.f32.gmra.mxu0 %v407
    %v481 = vpop.f32.mrf.mxu0
    %v482 = vadd.f32 %v376, %v481
    %v483 = vpop.f32.mrf.mxu0
    %v484 = vadd.f32 %v380, %v483
    %485 = vdwg.mxu0
    %486 = vmatprep.subr.mxu0 0.0
    %487 = vmatpush1.msra.mxu0 0.0
    %488 = vmatprep.subr.mxu0 0.0
    %489 = vmatpush1.msra.mxu0 0.0
    %490 = vmatprep.subr.mxu0 0.0
    %491 = vmatpush1.msra.mxu0 0.0
    %492 = vmatprep.subr.mxu0 0.0
    %493 = vmatpush1.msra.mxu0 0.0
    %494 = vmatprep.subr.mxu0 0.0
    %495 = vmatpush1.msra.mxu0 0.0
    %496 = vmatprep.subr.mxu0 0.0
    %497 = vmatpush1.msra.mxu0 0.0
    %498 = vmatprep.subr.mxu0 0.0
    %499 = vmatpush1.msra.mxu0 0.0
    %500 = vmatprep.subr.mxu0 0.0
    %501 = vmatpush1.msra.mxu0 0.0
    %502 = vmatprep.subr.mxu0 0.0
    %503 = vmatpush1.msra.mxu0 0.0
    %504 = vmatprep.subr.mxu0 0.0
    %505 = vmatpush1.msra.mxu0 0.0
    %506 = vmatprep.subr.mxu0 0.0
    %507 = vmatpush1.msra.mxu0 0.0
    %508 = vmatprep.subr.mxu0 0.0
    %509 = vmatpush1.msra.mxu0 0.0
    %510 = vmatprep.subr.mxu0 %v368
    %511 = vmatpush1.msra.mxu0 %v367
    %512 = vmatprep.subr.mxu0 %v362
    %513 = vmatpush1.msra.mxu0 %v361
    %514 = vmatprep.subr.mxu0 %v356
    %515 = vmatpush1.msra.mxu0 %v355
    %516 = vmatprep.subr.mxu0 %v350
    %517 = vmatpush1.msra.mxu0 %v349
    %518 = vmatprep.subr.mxu0 0.0
    %519 = vmatpush2.msra.mxu0 0.0
    %520 = vmatprep.subr.mxu0 0.0
    %521 = vmatpush2.msra.mxu0 0.0
    %522 = vmatprep.subr.mxu0 0.0
    %523 = vmatpush2.msra.mxu0 0.0
    %524 = vmatprep.subr.mxu0 0.0
    %525 = vmatpush2.msra.mxu0 0.0
    %526 = vmatprep.subr.mxu0 0.0
    %527 = vmatpush2.msra.mxu0 0.0
    %528 = vmatprep.subr.mxu0 0.0
    %529 = vmatpush2.msra.mxu0 0.0
    %530 = vmatprep.subr.mxu0 0.0
    %531 = vmatpush2.msra.mxu0 0.0
    %532 = vmatprep.subr.mxu0 0.0
    %533 = vmatpush2.msra.mxu0 0.0
    %534 = vmatprep.subr.mxu0 0.0
    %535 = vmatpush2.msra.mxu0 0.0
    %536 = vmatprep.subr.mxu0 0.0
    %537 = vmatpush2.msra.mxu0 0.0
    %538 = vmatprep.subr.mxu0 0.0
    %539 = vmatpush2.msra.mxu0 0.0
    %540 = vmatprep.subr.mxu0 0.0
    %541 = vmatpush2.msra.mxu0 0.0
    %542 = vmatprep.subr.mxu0 0.0
    %543 = vmatpush2.msra.mxu0 0.0
    %544 = vmatprep.subr.mxu0 0.0
    %545 = vmatpush2.msra.mxu0 0.0
    %546 = vmatprep.subr.mxu0 0.0
    %547 = vmatpush2.msra.mxu0 0.0
    %548 = vmatprep.subr.mxu0 0.0
    %549 = vmatpush2.msra.mxu0 0.0
    %550 = vmatprep.mubr.f32.mxu0 0.0
    %551 = vmatmul.mubr.f32.gmra.mxu0 %v404
    %v552 = vpop.f32.mrf.mxu0
    %v553 = vadd.f32 %v384, %v552
    %v554 = vpop.f32.mrf.mxu0
    %v555 = vadd.f32 %v388, %v554
    %556 = vmatprep.mubr.f32.mxu0 0.0
    %557 = vmatmul.mubr.f32.gmra.mxu0 %v407
    %v558 = vpop.f32.mrf.mxu0
    %v559 = vadd.f32 %v384, %v558
    %v560 = vpop.f32.mrf.mxu0
    %v561 = vadd.f32 %v388, %v560
    %562 = vdwg.mxu0
    %563 = vmatprep.subr.mxu0 0.0
    %564 = vmatpush1.msra.mxu0 0.0
    %565 = vmatprep.subr.mxu0 0.0
    %566 = vmatpush1.msra.mxu0 0.0
    %567 = vmatprep.subr.mxu0 0.0
    %568 = vmatpush1.msra.mxu0 0.0
    %569 = vmatprep.subr.mxu0 0.0
    %570 = vmatpush1.msra.mxu0 0.0
    %571 = vmatprep.subr.mxu0 0.0
    %572 = vmatpush1.msra.mxu0 0.0
    %573 = vmatprep.subr.mxu0 0.0
    %574 = vmatpush1.msra.mxu0 0.0
    %575 = vmatprep.subr.mxu0 0.0
    %576 = vmatpush1.msra.mxu0 0.0
    %577 = vmatprep.subr.mxu0 0.0
    %578 = vmatpush1.msra.mxu0 0.0
    %579 = vmatprep.subr.mxu0 0.0
    %580 = vmatpush1.msra.mxu0 0.0
    %581 = vmatprep.subr.mxu0 0.0
    %582 = vmatpush1.msra.mxu0 0.0
    %583 = vmatprep.subr.mxu0 0.0
    %584 = vmatpush1.msra.mxu0 0.0
    %585 = vmatprep.subr.mxu0 0.0
    %586 = vmatpush1.msra.mxu0 0.0
    %587 = vmatprep.subr.mxu0 %v370
    %588 = vmatpush1.msra.mxu0 %v369
    %589 = vmatprep.subr.mxu0 %v364
    %590 = vmatpush1.msra.mxu0 %v363
    %591 = vmatprep.subr.mxu0 %v358
    %592 = vmatpush1.msra.mxu0 %v357
    %593 = vmatprep.subr.mxu0 %v352
    %594 = vmatpush1.msra.mxu0 %v351
    %595 = vmatprep.subr.mxu0 0.0
    %596 = vmatpush2.msra.mxu0 0.0
    %597 = vmatprep.subr.mxu0 0.0
    %598 = vmatpush2.msra.mxu0 0.0
    %599 = vmatprep.subr.mxu0 0.0
    %600 = vmatpush2.msra.mxu0 0.0
    %601 = vmatprep.subr.mxu0 0.0
    %602 = vmatpush2.msra.mxu0 0.0
    %603 = vmatprep.subr.mxu0 0.0
    %604 = vmatpush2.msra.mxu0 0.0
    %605 = vmatprep.subr.mxu0 0.0
    %606 = vmatpush2.msra.mxu0 0.0
    %607 = vmatprep.subr.mxu0 0.0
    %608 = vmatpush2.msra.mxu0 0.0
    %609 = vmatprep.subr.mxu0 0.0
    %610 = vmatpush2.msra.mxu0 0.0
    %611 = vmatprep.subr.mxu0 0.0
    %612 = vmatpush2.msra.mxu0 0.0
    %613 = vmatprep.subr.mxu0 0.0
    %614 = vmatpush2.msra.mxu0 0.0
    %615 = vmatprep.subr.mxu0 0.0
    %616 = vmatpush2.msra.mxu0 0.0
    %617 = vmatprep.subr.mxu0 0.0
    %618 = vmatpush2.msra.mxu0 0.0
    %619 = vmatprep.subr.mxu0 0.0
    %620 = vmatpush2.msra.mxu0 0.0
    %621 = vmatprep.subr.mxu0 0.0
    %622 = vmatpush2.msra.mxu0 0.0
    %623 = vmatprep.subr.mxu0 0.0
    %624 = vmatpush2.msra.mxu0 0.0
    %625 = vmatprep.subr.mxu0 0.0
    %626 = vmatpush2.msra.mxu0 0.0
    %627 = vmatprep.mubr.f32.mxu0 0.0
    %628 = vmatmul.mubr.f32.gmra.mxu0 %v404
    %v629 = vpop.f32.mrf.mxu0
    %v630 = vadd.f32 %v392, %v629
    %v631 = vpop.f32.mrf.mxu0
    %v632 = vadd.f32 %v396, %v631
    %633 = vmatprep.mubr.f32.mxu0 0.0
    %634 = vmatmul.mubr.f32.gmra.mxu0 %v407
    %v635 = vpop.f32.mrf.mxu0
    %v636 = vadd.f32 %v392, %v635
    %v637 = vpop.f32.mrf.mxu0
    %v638 = vadd.f32 %v396, %v637
    %639 = vdwg.mxu0
    %v640 = vmul.f32 %v476, 1.442695
    %v641 = vpow.pop %v640
    %v642 = vmul.f32 %v478, 1.442695
    %v643 = vpow.pop %v642
    %v644 = vmul.f32 %v482, 1.442695
    %v645 = vpow.pop %v644
    %v646 = vmul.f32 %v484, 1.442695
    %v647 = vpow.pop %v646
    %v648 = vmax.f32 %v641, 1e-05
    %v649 = vmax.f32 %v643, 1e-05
    %v650 = vmax.f32 %v645, 1e-05
    %v651 = vmax.f32 %v647, 1e-05
    %v652 = vmin.f32 %v648, 1000000.0
    %v653 = vmin.f32 %v649, 1000000.0
    %v654 = vmin.f32 %v650, 1000000.0
    %v655 = vmin.f32 %v651, 1000000.0
    %656 = vst [vmem:[#allocation4] sm:$0xff] %v652
    %657 = vst.msk [vmem:[#allocation4 + $0x8] sm:$0xff] %vm75, %v653
    %658 = vst [vmem:[#allocation4 + $0x10] sm:$0xff] %v654
    %659 = vst.msk [vmem:[#allocation4 + $0x18] sm:$0xff] %vm75, %v655
    %v660 = vmax.f32 %v553, 0.0
    %v661 = vmax.f32 %v555, 0.0
    %v662 = vmax.f32 %v559, 0.0
    %v663 = vmax.f32 %v561, 0.0
    %v664 = vand.u32 2147483647, %v553
    %v665 = vand.u32 2147483647, %v555
    %v666 = vand.u32 2147483647, %v559
    %v667 = vand.u32 2147483647, %v561
    %v668 = vsub.f32 0.0, %v664
    %v669 = vsub.f32 0.0, %v665
    %v670 = vsub.f32 0.0, %v666
    %v671 = vsub.f32 0.0, %v667
    %v672 = vmul.f32 %v668, 1.442695
    %v673 = vpow.pop %v672
    %v674 = vmul.f32 %v669, 1.442695
    %v675 = vpow.pop %v674
    %v676 = vmul.f32 %v670, 1.442695
    %v677 = vpow.pop %v676
    %v678 = vmul.f32 %v671, 1.442695
    %v679 = vpow.pop %v678
    %v680 = vadd.f32 %v673, 1.0
    %v681 = vlog2.pop %v680
    %v682 = vmul.f32 %v681, 0.6931472
    %v683 = vmul.f32 -0.5, %v673
    %v684 = vadd.f32 %v683, 1.0
    %v685 = vmul.f32 %v684, %v673
    %v686 = vand.u32 2147483647, %v673
    %vm687 = vcmp.lt.f32.partialorder %v686, 0.0004427343
    %v688 = vsel %vm687, %v685, %v682
    %v689 = vadd.f32 %v675, 1.0
    %v690 = vlog2.pop %v689
    %v691 = vmul.f32 %v690, 0.6931472
    %v692 = vmul.f32 -0.5, %v675
    %v693 = vadd.f32 %v692, 1.0
    %v694 = vmul.f32 %v693, %v675
    %v695 = vand.u32 2147483647, %v675
    %vm696 = vcmp.lt.f32.partialorder %v695, 0.0004427343
    %v697 = vsel %vm696, %v694, %v691
    %v698 = vadd.f32 %v677, 1.0
    %v699 = vlog2.pop %v698
    %v700 = vmul.f32 %v699, 0.6931472
    %v701 = vmul.f32 -0.5, %v677
    %v702 = vadd.f32 %v701, 1.0
    %v703 = vmul.f32 %v702, %v677
    %v704 = vand.u32 2147483647, %v677
    %vm705 = vcmp.lt.f32.partialorder %v704, 0.0004427343
    %v706 = vsel %vm705, %v703, %v700
    %v707 = vadd.f32 %v679, 1.0
    %v708 = vlog2.pop %v707
    %v709 = vmul.f32 %v708, 0.6931472
    %v710 = vmul.f32 -0.5, %v679
    %v711 = vadd.f32 %v710, 1.0
    %v712 = vmul.f32 %v711, %v679
    %v713 = vand.u32 2147483647, %v679
    %vm714 = vcmp.lt.f32.partialorder %v713, 0.0004427343
    %v715 = vsel %vm714, %v712, %v709
    %v716 = vadd.f32 %v660, %v688
    %v717 = vadd.f32 %v661, %v697
    %v718 = vadd.f32 %v662, %v706
    %v719 = vadd.f32 %v663, %v715
    %v720 = vmax.f32 %v716, 0.0001
    %v721 = vmax.f32 %v717, 0.0001
    %v722 = vmax.f32 %v718, 0.0001
    %v723 = vmax.f32 %v719, 0.0001
    %v724 = vmin.f32 %v720, 10000.0
    %v725 = vmin.f32 %v721, 10000.0
    %v726 = vmin.f32 %v722, 10000.0
    %v727 = vmin.f32 %v723, 10000.0
    %728 = vst [vmem:[#allocation6] sm:$0xff] %v724
    %729 = vst.msk [vmem:[#allocation6 + $0x8] sm:$0xff] %vm75, %v725
    %730 = vst [vmem:[#allocation6 + $0x10] sm:$0xff] %v726
    %731 = vst.msk [vmem:[#allocation6 + $0x18] sm:$0xff] %vm75, %v727
    %v732 = vsub.f32 0.0, %v630
    %v733 = vsub.f32 0.0, %v632
    %v734 = vsub.f32 0.0, %v636
    %v735 = vsub.f32 0.0, %v638
    %v736 = vmul.f32 %v732, 1.442695
    %v737 = vpow.pop %v736
    %v738 = vmul.f32 %v733, 1.442695
    %v739 = vpow.pop %v738
    %v740 = vmul.f32 %v734, 1.442695
    %v741 = vpow.pop %v740
    %v742 = vmul.f32 %v735, 1.442695
    %v743 = vpow.pop %v742
    %v744 = vadd.f32 %v737, 1.0
    %v745 = vadd.f32 %v739, 1.0
    %v746 = vadd.f32 %v741, 1.0
    %v747 = vadd.f32 %v743, 1.0
    %v748 = vrcp.pop %v744
    %v749 = vrcp.pop %v745
    %v750 = vrcp.pop %v746
    %v751 = vrcp.pop %v747
    %752 = vst [vmem:[#allocation7] sm:$0xff] %v748
    %753 = vst.msk [vmem:[#allocation7 + $0x8] sm:$0xff] %vm75, %v749
    %754 = vst [vmem:[#allocation7 + $0x10] sm:$0xff] %v750
    %755 = vst.msk [vmem:[#allocation7 + $0x18] sm:$0xff] %vm75, %v751
    // Predicated region
    $region38: #{scdbec_forward.1} parent=1 // pred_check
      _
    $region39: #{scdbec_forward.1} parent=1 // pred_check_branch
      %757 = sbr.rel (0) target = $region41
    $region40: #{scdbec_forward.1} parent=1 // pred_region
      %s759 = ssub.s32 256, 256
      %760 = vsyncadd [#allocation3], %s759
      %s761 = sshll.u32 [#allocation2], 4
      %s762 = int_to_ptr.vmem [resolvable:$true] %s761
      %767 = dma.vmem_to_hbm [thread:$0]  %s762, 256, %s9, [#allocation3], 128, 128, 8
    $region41: #{scdbec_forward.1} parent=1 // pred_fallthru
      _
    // Predicated region
    $region42: #{scdbec_forward.1} parent=1 // pred_check
      _
    $region43: #{scdbec_forward.1} parent=1 // pred_check_branch
      %769 = sbr.rel (0) target = $region45
    $region44: #{scdbec_forward.1} parent=1 // pred_region
      %s771 = ssub.s32 512, 512
      %772 = vsyncadd [#allocation5], %s771
      %s773 = sshll.u32 [#allocation4], 4
      %s774 = int_to_ptr.vmem [resolvable:$true] %s773
      %779 = dma.vmem_to_hbm [thread:$0]  %s774, 512, %s10, [#allocation5], 256, 256, 16
    $region45: #{scdbec_forward.1} parent=1 // pred_fallthru
      _
    // Predicated region
    $region46: #{scdbec_forward.1} parent=1 // pred_check
      _
    $region47: #{scdbec_forward.1} parent=1 // pred_check_branch
      %781 = sbr.rel (0) target = $region49
    $region48: #{scdbec_forward.1} parent=1 // pred_region
      %s783 = ssub.s32 512, 512
      %784 = vsyncadd [#allocation5], %s783
      %s785 = sshll.u32 [#allocation6], 4
      %s786 = int_to_ptr.vmem [resolvable:$true] %s785
      %791 = dma.vmem_to_hbm [thread:$0]  %s786, 512, %s11, [#allocation5], 256, 256, 16
    $region49: #{scdbec_forward.1} parent=1 // pred_fallthru
      _
    // Predicated region
    $region50: #{scdbec_forward.1} parent=1 // pred_check
      _
    $region51: #{scdbec_forward.1} parent=1 // pred_check_branch
      %793 = sbr.rel (0) target = $region53
    $region52: #{scdbec_forward.1} parent=1 // pred_region
      %s795 = ssub.s32 512, 512
      %796 = vsyncadd [#allocation8], %s795
      %s797 = sshll.u32 [#allocation7], 4
      %s798 = int_to_ptr.vmem [resolvable:$true] %s797
      %803 = dma.vmem_to_hbm [thread:$0]  %s798, 512, %s12, [#allocation8], 256, 256, 16
    $region53: #{scdbec_forward.1} parent=1 // pred_fallthru
      _
    // Predicated region
    $region54: #{scdbec_forward.1} parent=1 // pred_check
      _
    $region55: #{scdbec_forward.1} parent=1 // pred_check_branch
      %805 = sbr.rel (0) target = $region57
    $region56: #{scdbec_forward.1} parent=1 // pred_region
      %806 = dma.done [#allocation3], 256
    $region57: #{scdbec_forward.1} parent=1 // pred_fallthru
      _
    // Predicated region
    $region58: #{scdbec_forward.1} parent=1 // pred_check
      _
    $region59: #{scdbec_forward.1} parent=1 // pred_check_branch
      %808 = sbr.rel (0) target = $region61
    $region60: #{scdbec_forward.1} parent=1 // pred_region
      %809 = dma.done [#allocation5], 512
    $region61: #{scdbec_forward.1} parent=1 // pred_fallthru
      _
    // Predicated region
    $region62: #{scdbec_forward.1} parent=1 // pred_check
      _
    $region63: #{scdbec_forward.1} parent=1 // pred_check_branch
      %811 = sbr.rel (0) target = $region65
    $region64: #{scdbec_forward.1} parent=1 // pred_region
      %812 = dma.done [#allocation5], 512
    $region65: #{scdbec_forward.1} parent=1 // pred_fallthru
      _
    // Predicated region
    $region66: #{scdbec_forward.1} parent=1 // pred_check
      _
    $region67: #{scdbec_forward.1} parent=1 // pred_check_branch
      %814 = sbr.rel (0) target = $region69
    $region68: #{scdbec_forward.1} parent=1 // pred_region
      %815 = dma.done [#allocation8], 512
    $region69: #{scdbec_forward.1} parent=1 // pred_fallthru
      _
    %816 = vsyncpa [#allocation3], 1
    %817 = vsyncpa [#allocation5], 1
    %818 = vsyncpa [#allocation8], 1

</llo_original>
